<compile_context>
chip_gen: v5e
topology: v5e:2x2
jax: 0.10.0
libtpu: 0.0.40
codegen_flags: <defaults>
</compile_context>

<pallas_src>
import functools

import jax
import jax.numpy as jnp
from jax.experimental import pallas as pl
from jax.experimental.pallas import tpu as pltpu

EPS = 1e-6


def _cdiv(a, b):
    return -(-a // b)


def _largest_divisor_leq(n, k):
    k = max(1, min(n, k))
    for d in range(k, 0, -1):
        if n % d == 0:
            return d
    return 1


def _choose_tiling(batch, num_ch, hw, target_bytes):
    """Pick (tb, r_tile, n_t) for blocks of shape (tb, C, r_tile, 128).

    Blocks are sized by a VMEM byte budget measured in f32 (the in-kernel
    compute dtype) rather than a fixed lane count; the batch dim is blocked
    when one batch element is far below the budget."""
    r_total = _cdiv(hw, 128)                 # 128-pixel rows per (b, c) plane
    bytes_per_row = num_ch * 128 * 4         # one row across all channels, f32
    rows_budget = max(8, target_bytes // bytes_per_row)
    if rows_budget >= r_total:
        r_tile, n_t = r_total, 1             # full spatial extent in one block
    else:
        n_t = _cdiv(r_total, rows_budget)
        r_tile = _cdiv(_cdiv(r_total, n_t), 8) * 8   # balanced, sublane aligned
        n_t = _cdiv(r_total, r_tile)

    if n_t == 1:
        block_bytes_one = num_ch * r_tile * 128 * 4
        tb_budget = max(1, target_bytes // block_bytes_one)
        tb_cap = max(1, batch // 2) if batch > 1 else 1  # >=2 steps for 2 TCs
        tb = _largest_divisor_leq(batch, min(tb_budget, tb_cap))
    else:
        tb = 1

    # If only a single grid step remains (batch == 1 with few rows), split the
    # spatial axis in two so both v7x TensorCores get work.
    if (batch // tb) * n_t < 2 and r_total >= 16:
        r_tile = _cdiv(_cdiv(r_total, 2), 8) * 8
        n_t = _cdiv(r_total, r_tile)
    return tb, r_tile, n_t


def _mask_reg_loss_kernel(ymask_ref, out_ref, *, num_ch, inv_hw, hw, r_tile,
                          needs_mask):
    """One (TB, C, r_tile, 128) block -> (TB, 1, 1, C) partial softmax means."""
    tb = out_ref.shape[0]

    # Per-pixel channel softmax on dense (TB, r_tile, 128) planes: every
    # sublane stays live for small C and the channel max / denominator are
    # pure VPU elementwise ops (no XLU sublane reduce per tile).
    planes = [ymask_ref[:, c, :, :].astype(jnp.float32) for c in range(num_ch)]
    m = planes[0]
    for p in planes[1:]:
        m = jnp.maximum(m, p)
    es = [jnp.exp(p - m) for p in planes]
    denom = es[0]
    for e in es[1:]:
        denom = denom + e

    # EUP approximate reciprocal + one Newton refinement (~exact f32), with
    # the 1/(H*W) spatial-mean scale folded in (one reciprocal per pixel).
    r0 = pl.reciprocal(denom, approx=True)
    r = (r0 * (2.0 - denom * r0)) * inv_hw

    if needs_mask:
        # Zero the contribution of padded pixels (flat spatial index >= H*W).
        t = pl.program_id(1)
        row = jax.lax.broadcasted_iota(jnp.int32, (1, r_tile, 128), 1)
        col = jax.lax.broadcasted_iota(jnp.int32, (1, r_tile, 128), 2)
        pix = (t * r_tile + row) * 128 + col
        r = jnp.where(pix < hw, r, 0.0)

    # Per-(tb, c) partial sums, assembled into C lanes with VPU selects only
    # (no lane/sublane shuffles, no concatenate).
    lane = jax.lax.broadcasted_iota(jnp.int32, (1, 1, 1, num_ch), 3)
    acc = jnp.zeros((tb, 1, 1, num_ch), jnp.float32)
    for c, e in enumerate(es):
        part = jnp.sum(e * r, axis=-1, keepdims=True)     # (tb, r_tile, 1)
        part = jnp.sum(part, axis=-2, keepdims=True)      # (tb, 1, 1)
        acc = acc + jnp.where(lane == c, part[..., None], 0.0)
    out_ref[...] = acc


def mask_reg_loss(label, y_mask, *, target_block_bytes=4 << 20):
    """label: (B, C); y_mask: (B, C, H, W) -> scalar float32 loss."""
    B, C, H, W = y_mask.shape
    hw = H * W

    tb, r_tile, n_t = _choose_tiling(B, C, hw, target_block_bytes)
    n_b = B // tb
    r_pad = n_t * r_tile
    hw_pad = r_pad * 128
    needs_mask = hw_pad != hw

    # Keep y_mask in its native dtype over the HBM DMA (bf16 stays bf16); the
    # cast to f32 happens in-kernel.  Pad the flattened spatial axis to the
    # (r_pad * 128) tile grid; padded pixels are masked out in the kernel.
    y_flat = y_mask.reshape(B, C, hw)
    if needs_mask:
        y_flat = jnp.pad(y_flat, ((0, 0), (0, 0), (0, hw_pad - hw)))
    y_planes = y_flat.reshape(B, C, r_pad, 128)

    kernel = functools.partial(
        _mask_reg_loss_kernel, num_ch=C, inv_hw=1.0 / hw, hw=hw,
        r_tile=r_tile, needs_mask=needs_mask)

    out_bytes = B * n_t * C * 4
    cost = pl.CostEstimate(
        flops=int(6 * B * C * hw_pad + 6 * B * hw_pad),
        transcendentals=int(B * C * hw_pad + B * hw_pad),
        bytes_accessed=int(y_planes.size * y_planes.dtype.itemsize + out_bytes))

    partials = pl.pallas_call(
        kernel,
        out_shape=jax.ShapeDtypeStruct((B, n_t, 1, C), jnp.float32),
        grid_spec=pltpu.PrefetchScalarGridSpec(
            num_scalar_prefetch=0,
            grid=(n_b, n_t),
            in_specs=[
                pl.BlockSpec((tb, C, r_tile, 128), lambda b, t: (b, 0, t, 0)),
            ],
            out_specs=pl.BlockSpec((tb, 1, 1, C), lambda b, t: (b, t, 0, 0)),
        ),
        compiler_params=pltpu.CompilerParams(
            dimension_semantics=("parallel", "parallel"),
            vmem_limit_bytes=32 * 1024 * 1024),
        cost_estimate=cost,
    )(y_planes)

    # Tiny O(B*C) finalize in plain JAX: combine partial sums and the
    # BCE-style loss of the original module.
    y_pred = jnp.sum(partials, axis=(1, 2))                  # (B, C)
    lab = label.astype(jnp.float32)
    loss = jnp.sum(-lab * jnp.log(y_pred + EPS)
                   - (1.0 - lab) * jnp.log(1.0 - y_pred + EPS))
    # TODO(synk): for very large C (>~64) a two-pass channel loop would bound
    # vreg pressure; current unrolled form is sized for typical class counts.
    return loss / jnp.float32(B)


def mask_reg_loss_ref(label, y_mask):
    sm = jax.nn.softmax(y_mask.astype(jnp.float32), axis=1)
    h, w = y_mask.shape[-2:]
    y_pred = jnp.sum(sm, axis=(-2, -1)) / (h * w)
    loss = jnp.sum(-label * jnp.log(y_pred + EPS)
                   - (1.0 - label) * jnp.log(1.0 - y_pred + EPS))
    return loss / label.shape[0]


if __name__ == "__main__":
    B, C, H, W = 2, 4, 16, 16
    key = jax.random.PRNGKey(0)
    k1, k2 = jax.random.split(key)
    y_mask = jax.random.normal(k1, (B, C, H, W), dtype=jnp.float32)
    label = (jax.random.uniform(k2, (B, C)) > 0.5).astype(jnp.float32)

    out = jax.jit(mask_reg_loss)(label, y_mask)
    jax.block_until_ready(out)

    ref = mask_reg_loss_ref(label, y_mask)
    assert jnp.allclose(out, ref, rtol=1e-5, atol=1e-5), (out, ref)
    print("KERNEL_OK")
</pallas_src>

<mosaic_0001>
module attributes {stable_mosaic.version = 11 : i64} {
  func.func @_mask_reg_loss_kernel(%arg0: i32, %arg1: i32, %arg2: memref<1x4x2x128xf32, #tpu.memory_space<vmem>>, %arg3: memref<1x1x1x4xf32, #tpu.memory_space<vmem>>) attributes {dimension_semantics = [#tpu.dimension_semantics<parallel>, #tpu.dimension_semantics<parallel>], iteration_bounds = array<i64: 2, 1>, scalar_prefetch = 0 : i64, scratch_operands = 0 : i64, tpu.core_type = #tpu.core_type<tc>, window_params = [{transform_indices = @transform_0, window_bounds = array<i64: 1, 4, 2, 128>}, {transform_indices = @transform_1, window_bounds = array<i64: 1, 1, 1, 4>}]} {
    %c0 = arith.constant 0 : index
    %c0_0 = arith.constant 0 : index
    %c0_1 = arith.constant 0 : index
    %c0_2 = arith.constant 0 : index
    %0 = vector.load %arg2[%c0, %c0_0, %c0_1, %c0_2] : memref<1x4x2x128xf32, #tpu.memory_space<vmem>>, vector<1x1x2x128xf32>
    %1 = vector.shape_cast %0 : vector<1x1x2x128xf32> to vector<1x2x128xf32>
    %c0_3 = arith.constant 0 : index
    %c1 = arith.constant 1 : index
    %c0_4 = arith.constant 0 : index
    %c0_5 = arith.constant 0 : index
    %2 = vector.load %arg2[%c0_3, %c1, %c0_4, %c0_5] : memref<1x4x2x128xf32, #tpu.memory_space<vmem>>, vector<1x1x2x128xf32>
    %3 = vector.shape_cast %2 : vector<1x1x2x128xf32> to vector<1x2x128xf32>
    %c0_6 = arith.constant 0 : index
    %c2 = arith.constant 2 : index
    %c0_7 = arith.constant 0 : index
    %c0_8 = arith.constant 0 : index
    %4 = vector.load %arg2[%c0_6, %c2, %c0_7, %c0_8] : memref<1x4x2x128xf32, #tpu.memory_space<vmem>>, vector<1x1x2x128xf32>
    %5 = vector.shape_cast %4 : vector<1x1x2x128xf32> to vector<1x2x128xf32>
    %c0_9 = arith.constant 0 : index
    %c3 = arith.constant 3 : index
    %c0_10 = arith.constant 0 : index
    %c0_11 = arith.constant 0 : index
    %6 = vector.load %arg2[%c0_9, %c3, %c0_10, %c0_11] : memref<1x4x2x128xf32, #tpu.memory_space<vmem>>, vector<1x1x2x128xf32>
    %7 = vector.shape_cast %6 : vector<1x1x2x128xf32> to vector<1x2x128xf32>
    %8 = arith.maximumf %1, %3 : vector<1x2x128xf32>
    %9 = arith.maximumf %8, %5 : vector<1x2x128xf32>
    %10 = arith.maximumf %9, %7 : vector<1x2x128xf32>
    %11 = arith.subf %1, %10 : vector<1x2x128xf32>
    %12 = math.exp %11 : vector<1x2x128xf32>
    %13 = arith.subf %3, %10 : vector<1x2x128xf32>
    %14 = math.exp %13 : vector<1x2x128xf32>
    %15 = arith.subf %5, %10 : vector<1x2x128xf32>
    %16 = math.exp %15 : vector<1x2x128xf32>
    %17 = arith.subf %7, %10 : vector<1x2x128xf32>
    %18 = math.exp %17 : vector<1x2x128xf32>
    %19 = arith.addf %12, %14 : vector<1x2x128xf32>
    %20 = arith.addf %19, %16 : vector<1x2x128xf32>
    %21 = arith.addf %20, %18 : vector<1x2x128xf32>
    %22 = tpu.reciprocal %21 {approx = true} : vector<1x2x128xf32> -> vector<1x2x128xf32>
    %23 = arith.mulf %21, %22 : vector<1x2x128xf32>
    %cst = arith.constant 2.000000e+00 : f32
    %24 = vector.broadcast %cst : f32 to vector<1x2x128xf32>
    %25 = arith.subf %24, %23 : vector<1x2x128xf32>
    %26 = arith.mulf %22, %25 : vector<1x2x128xf32>
    %cst_12 = arith.constant 3.906250e-03 : f32
    %27 = vector.broadcast %cst_12 : f32 to vector<1x2x128xf32>
    %28 = arith.mulf %26, %27 : vector<1x2x128xf32>
    %29 = tpu.iota {dimensions = array<i32: 3>} : vector<1x1x1x4xi32>
    %cst_13 = arith.constant 0.000000e+00 : f32
    %30 = vector.broadcast %cst_13 : f32 to vector<1x1x1x4xf32>
    %31 = arith.mulf %12, %28 : vector<1x2x128xf32>
    %cst_14 = arith.constant dense<0.000000e+00> : vector<1x2xf32>
    %32 = vector.multi_reduction <add>, %31, %cst_14 [2] : vector<1x2x128xf32> to vector<1x2xf32>
    %33 = vector.shape_cast %32 : vector<1x2xf32> to vector<1x2x1xf32>
    %cst_15 = arith.constant dense<0.000000e+00> : vector<1x1xf32>
    %34 = vector.multi_reduction <add>, %33, %cst_15 [1] : vector<1x2x1xf32> to vector<1x1xf32>
    %35 = vector.shape_cast %34 : vector<1x1xf32> to vector<1x1x1xf32>
    %c0_i32 = arith.constant 0 : i32
    %36 = vector.broadcast %c0_i32 : i32 to vector<1x1x1x4xi32>
    %37 = arith.cmpi eq, %29, %36 : vector<1x1x1x4xi32>
    %38 = vector.shape_cast %35 : vector<1x1x1xf32> to vector<1x1x1x1xf32>
    %cst_16 = arith.constant 0.000000e+00 : f32
    %39 = vector.shape_cast %38 : vector<1x1x1x1xf32> to vector<1x1x1x1xf32>
    %40 = vector.broadcast %39 : vector<1x1x1x1xf32> to vector<1x1x1x4xf32>
    %41 = vector.broadcast %cst_16 : f32 to vector<1x1x1x4xf32>
    %42 = arith.select %37, %40, %41 : vector<1x1x1x4xi1>, vector<1x1x1x4xf32>
    %43 = arith.addf %30, %42 : vector<1x1x1x4xf32>
    %44 = arith.mulf %14, %28 : vector<1x2x128xf32>
    %cst_17 = arith.constant dense<0.000000e+00> : vector<1x2xf32>
    %45 = vector.multi_reduction <add>, %44, %cst_17 [2] : vector<1x2x128xf32> to vector<1x2xf32>
    %46 = vector.shape_cast %45 : vector<1x2xf32> to vector<1x2x1xf32>
    %cst_18 = arith.constant dense<0.000000e+00> : vector<1x1xf32>
    %47 = vector.multi_reduction <add>, %46, %cst_18 [1] : vector<1x2x1xf32> to vector<1x1xf32>
    %48 = vector.shape_cast %47 : vector<1x1xf32> to vector<1x1x1xf32>
    %c1_i32 = arith.constant 1 : i32
    %49 = vector.broadcast %c1_i32 : i32 to vector<1x1x1x4xi32>
    %50 = arith.cmpi eq, %29, %49 : vector<1x1x1x4xi32>
    %51 = vector.shape_cast %48 : vector<1x1x1xf32> to vector<1x1x1x1xf32>
    %cst_19 = arith.constant 0.000000e+00 : f32
    %52 = vector.shape_cast %51 : vector<1x1x1x1xf32> to vector<1x1x1x1xf32>
    %53 = vector.broadcast %52 : vector<1x1x1x1xf32> to vector<1x1x1x4xf32>
    %54 = vector.broadcast %cst_19 : f32 to vector<1x1x1x4xf32>
    %55 = arith.select %50, %53, %54 : vector<1x1x1x4xi1>, vector<1x1x1x4xf32>
    %56 = arith.addf %43, %55 : vector<1x1x1x4xf32>
    %57 = arith.mulf %16, %28 : vector<1x2x128xf32>
    %cst_20 = arith.constant dense<0.000000e+00> : vector<1x2xf32>
    %58 = vector.multi_reduction <add>, %57, %cst_20 [2] : vector<1x2x128xf32> to vector<1x2xf32>
    %59 = vector.shape_cast %58 : vector<1x2xf32> to vector<1x2x1xf32>
    %cst_21 = arith.constant dense<0.000000e+00> : vector<1x1xf32>
    %60 = vector.multi_reduction <add>, %59, %cst_21 [1] : vector<1x2x1xf32> to vector<1x1xf32>
    %61 = vector.shape_cast %60 : vector<1x1xf32> to vector<1x1x1xf32>
    %c2_i32 = arith.constant 2 : i32
    %62 = vector.broadcast %c2_i32 : i32 to vector<1x1x1x4xi32>
    %63 = arith.cmpi eq, %29, %62 : vector<1x1x1x4xi32>
    %64 = vector.shape_cast %61 : vector<1x1x1xf32> to vector<1x1x1x1xf32>
    %cst_22 = arith.constant 0.000000e+00 : f32
    %65 = vector.shape_cast %64 : vector<1x1x1x1xf32> to vector<1x1x1x1xf32>
    %66 = vector.broadcast %65 : vector<1x1x1x1xf32> to vector<1x1x1x4xf32>
    %67 = vector.broadcast %cst_22 : f32 to vector<1x1x1x4xf32>
    %68 = arith.select %63, %66, %67 : vector<1x1x1x4xi1>, vector<1x1x1x4xf32>
    %69 = arith.addf %56, %68 : vector<1x1x1x4xf32>
    %70 = arith.mulf %18, %28 : vector<1x2x128xf32>
    %cst_23 = arith.constant dense<0.000000e+00> : vector<1x2xf32>
    %71 = vector.multi_reduction <add>, %70, %cst_23 [2] : vector<1x2x128xf32> to vector<1x2xf32>
    %72 = vector.shape_cast %71 : vector<1x2xf32> to vector<1x2x1xf32>
    %cst_24 = arith.constant dense<0.000000e+00> : vector<1x1xf32>
    %73 = vector.multi_reduction <add>, %72, %cst_24 [1] : vector<1x2x1xf32> to vector<1x1xf32>
    %74 = vector.shape_cast %73 : vector<1x1xf32> to vector<1x1x1xf32>
    %c3_i32 = arith.constant 3 : i32
    %75 = vector.broadcast %c3_i32 : i32 to vector<1x1x1x4xi32>
    %76 = arith.cmpi eq, %29, %75 : vector<1x1x1x4xi32>
    %77 = vector.shape_cast %74 : vector<1x1x1xf32> to vector<1x1x1x1xf32>
    %cst_25 = arith.constant 0.000000e+00 : f32
    %78 = vector.shape_cast %77 : vector<1x1x1x1xf32> to vector<1x1x1x1xf32>
    %79 = vector.broadcast %78 : vector<1x1x1x1xf32> to vector<1x1x1x4xf32>
    %80 = vector.broadcast %cst_25 : f32 to vector<1x1x1x4xf32>
    %81 = arith.select %76, %79, %80 : vector<1x1x1x4xi1>, vector<1x1x1x4xf32>
    %82 = arith.addf %69, %81 : vector<1x1x1x4xf32>
    %c0_26 = arith.constant 0 : index
    %c0_27 = arith.constant 0 : index
    %c0_28 = arith.constant 0 : index
    %c0_29 = arith.constant 0 : index
    %83 = vector.load %arg3[%c0_26, %c0_27, %c0_28, %c0_29] : memref<1x1x1x4xf32, #tpu.memory_space<vmem>>, vector<1x1x1x4xf32>
    tpu.vector_store %arg3[%c0_26, %c0_27, %c0_28, %c0_29], %82 {strides = array<i32>} : memref<1x1x1x4xf32, #tpu.memory_space<vmem>>, vector<1x1x1x4xf32>,
    return
  }
  func.func @transform_0(%arg0: i32, %arg1: i32) -> (i32, i32, i32, i32) {
    %c0_i32 = arith.constant 0 : i32
    %c0_i32_0 = arith.constant 0 : i32
    %c0_i32_1 = arith.constant 0 : i32
    return %arg0, %c0_i32, %arg1, %c0_i32_0 : i32, i32, i32, i32
  }
  func.func @transform_1(%arg0: i32, %arg1: i32) -> (i32, i32, i32, i32) {
    %c0_i32 = arith.constant 0 : i32
    %c0_i32_0 = arith.constant 0 : i32
    %c0_i32_1 = arith.constant 0 : i32
    return %arg0, %arg1, %c0_i32, %c0_i32_0 : i32, i32, i32, i32
  }
}

</mosaic_0001>

<llo_original>
// kernel: mask_reg_loss.1
$region0: #{mask_reg_loss.1}
  #allocation0 [shape = 'u32[]', space=smem, size = 0x4, offset = 0x4, fixed_abs, tag = 'smem constant byte address 0x4 - core index']
  #allocation1 [shape = 'u32[72,128]{1,0:T(1,128)}', space=vmem, size = 0x9000, scoped, tag = 'internal scratch']
  %s0 = inlined_call_operand.vmem [shape: f32[2,4,2,128], index: 0, kind: input, shape index: {}]
  %s1 = inlined_call_operand.vmem [shape: f32[2,1,1,4], index: 1, kind: output, shape index: {}]
  %s2 = sld [smem:[#allocation0]]
  $region37: #{mask_reg_loss.1} parent=0
    _
  %s4 = ssub.s32 1, %s2
  %s5 = scalar_select 0, %s4, %s2
  loop: start=0, step=1, limit=4
  $region2: #{mask_reg_loss.1} parent=0 // loop_pre_header
    _
  $region3: #{mask_reg_loss.1} parent=0 // loop_header
    %s7 = sphi 0, %s11
    %p8 = scmp.ge.s32.totalorder %s7, 4
    %s14 = sphi 0, %s26
    %s15 = sphi 0, %s22
    %s16 = sphi 0, %s14
    %s17 = sphi 0, %s15
    %s18 = sphi 0, %s16
    %s19 = sphi 0, %s17
    %s31 = sphi 0, %s33
    %s34 = sphi 0, %s31
    %s35 = sphi 0, %s34
    %s51 = sphi 0, %s35
    %s59 = sphi 0, %s61
    %s62 = sphi 0, %s59
    %s63 = sphi 0, %s62
    %s79 = sphi 0, %s63
  $region4: #{mask_reg_loss.1} parent=0 // loop_header_branch
    %10 = sbr.rel (%p8) target = $region8
  $region5: #{mask_reg_loss.1} parent=0 // loop_body
    %s12 = ssub.s32 %s7, 1
    %s13 = ssub.s32 %s7, 2
    %s20 = sadd.s32 1, %s15
    %p21 = scmp.ge.s32.totalorder %s20, 1
    %s22 = scalar_select %p21, 0, %s20
    %s23 = sadd.s32 1, %s14
    %s24 = scalar_select %p21, %s23, %s14
    %p25 = scmp.ge.s32.totalorder %s24, 2
    %s26 = scalar_select %p25, 0, %s24
    %s27 = ssub.s32 %s14, %s26
    %s28 = ssub.s32 %s15, %s22
    %s29 = sor.u32 %s27, %s28
    %p30 = scmp.eq.s32.totalorder %s29, 0
    %s32 = sadd.s32 %s31, 1
    %s33 = scalar_select %p30, %s31, %s32
    %p36 = pneg %p30
    %p37 = scmp.eq.s32.totalorder %s7, 1
    %p38 = por %p36, %p37
    %p39 = scmp.ne.s32.totalorder %s31, %s34
    %p40 = scmp.eq.s32.totalorder %s7, 0
    %p41 = por %p39, %p40
    %p42 = scmp.ne.s32.totalorder %s31, %s34
    %p43 = scmp.eq.s32.totalorder %s12, 1
    %p44 = por %p42, %p43
    %p45 = scmp.ne.s32.totalorder %s34, %s35
    %p46 = scmp.eq.s32.totalorder %s12, 0
    %p47 = por %p45, %p46
    %p48 = scmp.ne.s32.totalorder %s34, %s35
    %p49 = scmp.eq.s32.totalorder %s13, 1
    %p50 = por %p48, %p49
    %p52 = scmp.ne.s32.totalorder %s35, %s51
    %p53 = scmp.eq.s32.totalorder %s13, 0
    %p54 = por %p52, %p53
    %s55 = ssub.s32 %s14, %s26
    %s56 = ssub.s32 %s15, %s22
    %s57 = sor.u32 %s55, %s56
    %p58 = scmp.eq.s32.totalorder %s57, 0
    %s60 = sadd.s32 %s59, 1
    %s61 = scalar_select %p58, %s59, %s60
    %p64 = pneg %p58
    %p65 = scmp.eq.s32.totalorder %s7, 1
    %p66 = por %p64, %p65
    %p67 = scmp.ne.s32.totalorder %s59, %s62
    %p68 = scmp.eq.s32.totalorder %s7, 0
    %p69 = por %p67, %p68
    %p70 = scmp.ne.s32.totalorder %s59, %s62
    %p71 = scmp.eq.s32.totalorder %s12, 1
    %p72 = por %p70, %p71
    %p73 = scmp.ne.s32.totalorder %s62, %s63
    %p74 = scmp.eq.s32.totalorder %s12, 0
    %p75 = por %p73, %p74
    %p76 = scmp.ne.s32.totalorder %s62, %s63
    %p77 = scmp.eq.s32.totalorder %s13, 1
    %p78 = por %p76, %p77
    %p80 = scmp.ne.s32.totalorder %s63, %s79
    %p81 = scmp.eq.s32.totalorder %s13, 0
    %p82 = por %p80, %p81
    %p83 = scmp.le.s32.totalorder 1, %s7
    %p84 = scmp.lt.s32.totalorder %s7, 3
    %p85 = pnand %p83, %p84
    %p86 = pneg %p85
    // Predicated region
    $region9: #{mask_reg_loss.1} parent=5 // pred_check
      _
    $region10: #{mask_reg_loss.1} parent=5 // pred_check_branch
      %88 = sbr.rel (%p85) target = $region12
    $region11: #{mask_reg_loss.1} parent=5 // pred_region
      %s89 = ssub.s32 %s7, 1
    $region12: #{mask_reg_loss.1} parent=5 // pred_fallthru
      _
    %p90 = scmp.lt.s32.totalorder %s7, 2
    // Predicated region
    $region13: #{mask_reg_loss.1} parent=5 // pred_check
      %p91 = pneg %p90
    $region14: #{mask_reg_loss.1} parent=5 // pred_check_branch
      %93 = sbr.rel (%p91) target = $region16
    $region15: #{mask_reg_loss.1} parent=5 // pred_region
      // Predicated region
      $region17: #{mask_reg_loss.1} parent=15 // pred_check
        %p94 = pneg %p41
      $region18: #{mask_reg_loss.1} parent=15 // pred_check_branch
        %96 = sbr.rel (%p94) target = $region20
      $region19: #{mask_reg_loss.1} parent=15 // pred_region
        %p97 = scmp.lt.s32.totalorder %s14, 1
        %s98 = scalar_select %p97, %s14, 1
        %p99 = scmp.lt.s32.totalorder %s15, 0
        %s100 = scalar_select %p99, %s15, 0
        %s101 = smul.addr %s98, 4
        %s102 = sadd.s32 %s100, %s101
        %s103 = smul.addr %s102, 2
        %s104 = scalar_lea.vmem %s0, %s103
      $region20: #{mask_reg_loss.1} parent=15 // pred_fallthru
        _
    $region16: #{mask_reg_loss.1} parent=5 // pred_fallthru
      _
    %p105 = scmp.le.s32.totalorder 1, %s7
    %p106 = scmp.lt.s32.totalorder %s7, 3
    %p107 = pnand %p105, %p106
    %p108 = pneg %p107
    // Predicated region
    $region21: #{mask_reg_loss.1} parent=5 // pred_check
      _
    $region22: #{mask_reg_loss.1} parent=5 // pred_check_branch
      %110 = sbr.rel (%p107) target = $region24
    $region23: #{mask_reg_loss.1} parent=5 // pred_region
      %s111 = ssub.s32 %s7, 1
      %p112 = scmp.lt.s32.totalorder %s16, 1
      %s113 = scalar_select %p112, %s16, 1
      %p114 = scmp.lt.s32.totalorder %s17, 0
      %s115 = scalar_select %p114, %s17, 0
      %s116 = smul.addr %s113, 4
      %s117 = sadd.s32 %s115, %s116
      %s118 = smul.addr %s117, 2
      %s119 = scalar_lea.vmem %s0, %s118
      %p120 = pneg %p47
      %p121 = pneg %p44
      %p122 = pneg %p75
      %p123 = pneg %p72
      %p124 = scmp.lt.s32.totalorder %s16, 1
      %s125 = scalar_select %p124, %s16, 1
      %p126 = scmp.lt.s32.totalorder %s17, 0
      %s127 = scalar_select %p126, %s17, 0
      %s128 = sadd.s32 %s127, %s125
      %s129 = scalar_lea.vmem %s1, %s128
      %p130 = scmp.lt.s32.totalorder %s16, 1
      %s131 = scalar_select %p130, %s16, 1
      %p132 = scmp.lt.s32.totalorder %s17, 0
      %s133 = scalar_select %p132, %s17, 0
      %s134 = smul.addr %s131, 4
      %s135 = sadd.s32 %s133, %s134
      %s136 = smul.addr %s135, 2
      %s137 = scalar_lea.vmem %s0, %s136
      %p138 = scmp.lt.s32.totalorder %s16, 1
      %s139 = scalar_select %p138, %s16, 1
      %p140 = scmp.lt.s32.totalorder %s17, 0
      %s141 = scalar_select %p140, %s17, 0
      %s142 = sadd.s32 %s141, %s139
      %s143 = scalar_lea.vmem %s1, %s142
      %v144 = vld [vmem:[%s137] sm:$0x3]
      %s145 = scalar_lea.vmem %s137, 2
      %v146 = vld [vmem:[%s145] sm:$0x3]
      %s147 = scalar_lea.vmem %s137, 4
      %v148 = vld [vmem:[%s147] sm:$0x3]
      %s149 = scalar_lea.vmem %s137, 6
      %v150 = vld [vmem:[%s149] sm:$0x3]
      %v151 = vmax.f32 %v144, %v146
      %v152 = vmax.f32 %v151, %v148
      %v153 = vmax.f32 %v152, %v150
      %v154 = vsub.f32 %v144, %v153
      %v155 = vmul.f32 %v154, 1.442695
      %v156 = vpow.pop %v155
      %v157 = vsub.f32 %v146, %v153
      %v158 = vmul.f32 %v157, 1.442695
      %v159 = vpow.pop %v158
      %v160 = vsub.f32 %v148, %v153
      %v161 = vmul.f32 %v160, 1.442695
      %v162 = vpow.pop %v161
      %v163 = vsub.f32 %v150, %v153
      %v164 = vmul.f32 %v163, 1.442695
      %v165 = vpow.pop %v164
      %v166 = vadd.f32 %v156, %v159
      %v167 = vadd.f32 %v166, %v162
      %v168 = vadd.f32 %v167, %v165
      %v169 = vrcp.pop %v168
      %v170 = vmul.f32 %v168, %v169
      %v171 = vsub.f32 2.0, %v170
      %v172 = vmul.f32 %v169, %v171
      %v173 = vmul.f32 %v172, 0.00390625
      %v174 = vlaneseq
      %v175 = vand.u32 %v174, 127
      %v176 = vmul.f32 %v156, %v173
      %vm177 = vcmask 1041408
      %v178 = vsel %vm177, %v176, 0.0
      %179 = vadd.xlane.f32.xlu0 %v178
      %v180 = vpop.xlane.xlu0 %179
      %v181 = vsel %vm177, %v180, 0.0
      %v182 = vrot.slane %v181, 4
      %v183 = vadd.f32 %v181, %v182
      %v184 = vrot.slane %v183, 2
      %v185 = vadd.f32 %v183, %v184
      %v186 = vrot.slane %v185, 1
      %v187 = vadd.f32 %v185, %v186
      %vm188 = vcmp.eq.s32.totalorder %v175, 0
      %v189 = vsel %vm188, %v187, 0.0
      %v190 = vadd.f32 %v189, 0.0
      %v191 = vmul.f32 %v159, %v173
      %v192 = vsel %vm177, %v191, 0.0
      %193 = vadd.xlane.f32.xlu0 %v192
      %v194 = vpop.xlane.xlu0 %193
      %v195 = vsel %vm177, %v194, 0.0
      %v196 = vrot.slane %v195, 4
      %v197 = vadd.f32 %v195, %v196
      %v198 = vrot.slane %v197, 2
      %v199 = vadd.f32 %v197, %v198
      %v200 = vrot.slane %v199, 1
      %v201 = vadd.f32 %v199, %v200
      %vm202 = vcmp.eq.s32.totalorder %v175, 1
      %v203 = vsel %vm202, %v201, 0.0
      %v204 = vadd.f32 %v190, %v203
      %v205 = vmul.f32 %v162, %v173
      %v206 = vsel %vm177, %v205, 0.0
      %207 = vadd.xlane.f32.xlu0 %v206
      %v208 = vpop.xlane.xlu0 %207
      %v209 = vsel %vm177, %v208, 0.0
      %v210 = vrot.slane %v209, 4
      %v211 = vadd.f32 %v209, %v210
      %v212 = vrot.slane %v211, 2
      %v213 = vadd.f32 %v211, %v212
      %v214 = vrot.slane %v213, 1
      %v215 = vadd.f32 %v213, %v214
      %vm216 = vcmp.eq.s32.totalorder %v175, 2
      %v217 = vsel %vm216, %v215, 0.0
      %v218 = vadd.f32 %v204, %v217
      %v219 = vmul.f32 %v165, %v173
      %v220 = vsel %vm177, %v219, 0.0
      %221 = vadd.xlane.f32.xlu0 %v220
      %v222 = vpop.xlane.xlu0 %221
      %v223 = vsel %vm177, %v222, 0.0
      %v224 = vrot.slane %v223, 4
      %v225 = vadd.f32 %v223, %v224
      %v226 = vrot.slane %v225, 2
      %v227 = vadd.f32 %v225, %v226
      %v228 = vrot.slane %v227, 1
      %v229 = vadd.f32 %v227, %v228
      %vm230 = vcmp.eq.s32.totalorder %v175, 3
      %v231 = vsel %vm230, %v229, 0.0
      %v232 = vadd.f32 %v218, %v231
      %vm233 = vcmask 24576
      %234 = vst.msk [vmem:[%s143] sm:$0x1] %vm233, %v232
      %p235 = scmp.lt.s32.totalorder %s16, 1
      %s236 = scalar_select %p235, %s16, 1
      %p237 = scmp.lt.s32.totalorder %s17, 0
      %s238 = scalar_select %p237, %s17, 0
      %s239 = sadd.s32 %s238, %s236
      %s240 = scalar_lea.vmem %s1, %s239
      // Predicated region
      $region25: #{mask_reg_loss.1} parent=23 // pred_check
        %p241 = pneg %p72
      $region26: #{mask_reg_loss.1} parent=23 // pred_check_branch
        %243 = sbr.rel (%p241) target = $region28
      $region27: #{mask_reg_loss.1} parent=23 // pred_region
        _
      $region28: #{mask_reg_loss.1} parent=23 // pred_fallthru
        _
    $region24: #{mask_reg_loss.1} parent=5 // pred_fallthru
      _
    %p244 = scmp.le.s32.totalorder 2, %s7
    // Predicated region
    $region29: #{mask_reg_loss.1} parent=5 // pred_check
      %p245 = pneg %p244
    $region30: #{mask_reg_loss.1} parent=5 // pred_check_branch
      %247 = sbr.rel (%p245) target = $region32
    $region31: #{mask_reg_loss.1} parent=5 // pred_region
      %s248 = ssub.s32 %s7, 2
      // Predicated region
      $region33: #{mask_reg_loss.1} parent=31 // pred_check
        %p249 = pneg %p78
      $region34: #{mask_reg_loss.1} parent=31 // pred_check_branch
        %251 = sbr.rel (%p249) target = $region36
      $region35: #{mask_reg_loss.1} parent=31 // pred_region
        %p252 = scmp.lt.s32.totalorder %s18, 1
        %s253 = scalar_select %p252, %s18, 1
        %p254 = scmp.lt.s32.totalorder %s19, 0
        %s255 = scalar_select %p254, %s19, 0
        %s256 = sadd.s32 %s255, %s253
        %s257 = scalar_lea.vmem %s1, %s256
      $region36: #{mask_reg_loss.1} parent=31 // pred_fallthru
        _
    $region32: #{mask_reg_loss.1} parent=5 // pred_fallthru
      _
  $region6: #{mask_reg_loss.1} parent=0 // loop_footer
    %s11 = sadd.s32 1, %s7
  $region7: #{mask_reg_loss.1} parent=0 // loop_footer_branch
    %6 = sbr.rel target = $region3
  $region8: #{mask_reg_loss.1} parent=0 // loop_exit
    _

</llo_original>
